<compile_context>
chip_gen: v7x
topology: tpu7x:2x2x1
jax: 0.10.0
libtpu: 0.0.40
codegen_flags: <defaults>
</compile_context>

<pallas_src>
import functools

import numpy as np
import jax
import jax.numpy as jnp
from jax.experimental import pallas as pl
from jax.experimental.pallas import tpu as pltpu

_MIB = 1024 * 1024


def _vmem_config():
    """Chip-aware VMEM budgets.

    Returns (working_set_budget_bytes, vmem_limit_bytes, target_grid_steps).
    v7x has 64 MiB VMEM per TensorCore (2 TCs/chip); v5e/v6e have 128 MiB and a
    single TC.  The scoped limit is raised well above the small defaults
    (16/32 MiB) but kept under physical capacity with headroom for Mosaic's
    internal scratch.
    """
    try:
        cap = int(pltpu.get_tpu_info().vmem_capacity_bytes)
    except Exception:
        cap = 64 * _MIB  # conservative (v7x-sized) fallback
    vmem_limit = min(cap - 8 * _MIB, 100 * _MIB)   # 56 MiB on v7x, 100 MiB on v5e/v6e
    budget = vmem_limit - 8 * _MIB                 # 48 MiB on v7x, 92 MiB on v5e/v6e
    # >= 4 software-pipeline steps per core; on v7x the parallel batch axis is
    # split across 2 TensorCores, so target 8 total steps there.
    steps = 8 if cap <= 80 * _MIB else 4
    return budget, vmem_limit, steps


def _channel_conv1d(y, w_ref, k):
    """k-tap 1-D conv over the channel axis with zero padding.

    y:     (Bt, C, 1) float32 pooled means (channels on the sublane axis).
    w_ref: (k,) conv weights in SMEM (read as scalars, taps unrolled).
    """
    bt, c, _ = y.shape
    pad = (k - 1) // 2
    if pad > 0:
        z = jnp.zeros((bt, pad, 1), dtype=y.dtype)
        y_ext = jnp.concatenate([z, y, z], axis=1)  # (Bt, C + 2*pad, 1)
    else:
        y_ext = y
    yc = w_ref[0] * y_ext[:, 0:c, :]
    for j in range(1, k):
        yc = yc + w_ref[j] * y_ext[:, j:j + c, :]
    return yc


def _eca_single_pass_kernel(w_ref, x_ref, o_ref, *, inv_hw, k):
    # x_ref/o_ref: (Bt, C, HW) in the native dtype; w_ref: (k,) f32 in SMEM.
    # Widening reduce (no full-tile f32 temporary for bf16 inputs).
    s = jnp.sum(x_ref[...], axis=-1, keepdims=True, dtype=jnp.float32)  # (Bt,C,1)
    gate = jax.nn.sigmoid(_channel_conv1d(s * inv_hw, w_ref, k))        # f32
    o_ref[...] = x_ref[...] * gate.astype(o_ref.dtype)


def _eca_two_phase_kernel(w_ref, x_ref, o_ref, acc_ref, *,
                          inv_hw, k, num_tiles, last_valid, ragged):
    # grid = (B, phase, tile); x_ref/o_ref: (1, C, tile_hw); acc_ref: (1, C, 1) f32.
    p = pl.program_id(1)
    t = pl.program_id(2)

    @pl.when((p == 0) & (t == 0))
    def _init():
        acc_ref[...] = jnp.zeros_like(acc_ref)

    @pl.when((p == 0) & (t < num_tiles - 1))
    def _reduce_full():
        acc_ref[...] += jnp.sum(x_ref[...], axis=-1, keepdims=True,
                                dtype=jnp.float32)

    # ORDERING NOTE: this block is traced after _init/_reduce_full and must
    # both fold in the (possibly ragged) last tile and finalize the gate, so
    # acc_ref already holds the gate when phase 1 starts.
    @pl.when((p == 0) & (t == num_tiles - 1))
    def _reduce_last_and_gate():
        xt = x_ref[...]
        if ragged:
            # Without wrapper-side padding the last tile reads past HW; mask
            # the out-of-range lanes so they do not perturb the pooled sum.
            col = jax.lax.broadcasted_iota(jnp.int32, xt.shape, 2)
            xt = jnp.where(col < last_valid, xt, jnp.zeros_like(xt))
        acc_ref[...] += jnp.sum(xt, axis=-1, keepdims=True, dtype=jnp.float32)
        y = acc_ref[...] * inv_hw
        acc_ref[...] = jax.nn.sigmoid(_channel_conv1d(y, w_ref, k))

    @pl.when(p == 1)
    def _apply():
        # OOB lanes of the ragged last tile produce garbage * gate, but their
        # stores fall outside the array and are dropped.
        o_ref[...] = x_ref[...] * acc_ref[...].astype(o_ref.dtype)


def eca_forward(x, conv_w, *, max_working_set_bytes=None):
    """x: (B, C, H, W). conv_w: (k,) Conv1d weights (no bias)."""
    B, C, H, W = x.shape
    k = int(conv_w.shape[0])
    HW = H * W
    itemsize = jnp.dtype(x.dtype).itemsize

    budget, vmem_limit, target_steps = _vmem_config()
    if max_working_set_bytes is not None:
        budget = int(max_working_set_bytes)

    # Contiguous trailing-dim merge: a metadata-only reshape, no HBM copy.
    x_flat = x.reshape(B, C, HW)
    inv_hw = 1.0 / float(HW)
    slab = C * HW * itemsize  # one (1, C, HW) slice

    if 4 * slab <= budget:
        # ---------------- single-pass path ---------------------------------
        # Pack batch elements per grid step, but keep >= target_steps grid
        # steps so the DMA/compute/writeback pipeline stays full (and both
        # v7x TensorCores get work).
        bt_cap = max(1, B // target_steps)
        Bt = 1
        for cand in range(bt_cap, 0, -1):
            if B % cand == 0 and 4 * cand * slab <= budget:
                Bt = cand
                break
        grid = (B // Bt,)
        kernel = functools.partial(_eca_single_pass_kernel, inv_hw=inv_hw, k=k)
        cost = pl.CostEstimate(
            flops=int(2 * B * C * HW + 2 * k * B * C),
            transcendentals=int(B * C),
            bytes_accessed=int(2 * B * C * HW * itemsize + k * 4),
        )
        # Block last two dims equal the full (C, HW) extents, so the (8,128)
        # divisibility rule does not apply; non-128-aligned HW just gets a
        # masked tail store instead of an extra pad/slice HBM pass.
        out_flat = pl.pallas_call(
            kernel,
            out_shape=jax.ShapeDtypeStruct((B, C, HW), x.dtype),
            grid=grid,
            in_specs=[
                pl.BlockSpec(memory_space=pltpu.MemorySpace.SMEM),  # conv_w (k,)
                pl.BlockSpec((Bt, C, HW), lambda b: (b, 0, 0)),
            ],
            out_specs=pl.BlockSpec((Bt, C, HW), lambda b: (b, 0, 0)),
            compiler_params=pltpu.CompilerParams(
                dimension_semantics=("parallel",),
                vmem_limit_bytes=vmem_limit,
            ),
            cost_estimate=cost,
        )(conv_w, x_flat)
    else:
        # ---------------- two-phase HW-tiled path ---------------------------
        # Phase 0 streams HW tiles accumulating the per-channel sum into a
        # VMEM scratch (and finalizes the sigmoid gate on the last tile);
        # phase 1 re-streams the tiles and writes x * gate.
        tile_hw = (budget // (4 * C * itemsize)) // 128 * 128
        tile_hw = max(128, int(tile_hw))
        if tile_hw >= HW:
            tile_hw = HW  # single tile; block last dim equals the full extent
        num_tiles = pl.cdiv(HW, tile_hw)
        ragged = (HW % tile_hw) != 0
        last_valid = HW - (num_tiles - 1) * tile_hw

        kernel = functools.partial(
            _eca_two_phase_kernel, inv_hw=inv_hw, k=k,
            num_tiles=num_tiles, last_valid=last_valid, ragged=ragged)
        cost = pl.CostEstimate(
            flops=int(2 * B * C * HW + 2 * k * B * C),
            transcendentals=int(B * C),
            bytes_accessed=int(3 * B * C * HW * itemsize + k * 4),
        )
        out_flat = pl.pallas_call(
            kernel,
            out_shape=jax.ShapeDtypeStruct((B, C, HW), x.dtype),
            grid=(B, 2, num_tiles),  # batch (parallel) x phase x HW-tile
            in_specs=[
                pl.BlockSpec(memory_space=pltpu.MemorySpace.SMEM),  # conv_w (k,)
                pl.BlockSpec((1, C, tile_hw), lambda b, p, t: (b, 0, t)),
            ],
            # Phase 0 never writes o_ref; parking the output block on tile 0
            # means the block index does not change until phase 1, so the only
            # HBM write-backs carry phase-1 data (each tile written exactly
            # once).  Correct because (a) phase-1 t=0 fully overwrites the
            # parked block before any write-back and (b) the gate is finalized
            # on phase-0's last tile above.  Keep these invariants if refactoring.
            out_specs=pl.BlockSpec((1, C, tile_hw), lambda b, p, t: (b, 0, t * p)),
            scratch_shapes=[pltpu.VMEM((1, C, 1), jnp.float32)],
            compiler_params=pltpu.CompilerParams(
                dimension_semantics=("parallel", "arbitrary", "arbitrary"),
                vmem_limit_bytes=vmem_limit,
            ),
            cost_estimate=cost,
        )(conv_w, x_flat)

    return out_flat.reshape(B, C, H, W)


def eca_reference(x, conv_w):
    """Pure-JAX reference mirroring the PyTorch forward."""
    B, C, H, W = x.shape
    k = conv_w.shape[0]
    pad = (k - 1) // 2
    y = jnp.mean(x.astype(jnp.float32), axis=(2, 3))  # (B, C)
    y_pad = jnp.pad(y, ((0, 0), (pad, pad)))
    yc = jnp.zeros_like(y)
    for j in range(k):
        yc = yc + conv_w[j] * y_pad[:, j:j + C]
    gate = jax.nn.sigmoid(yc)[:, :, None, None]
    return (x * gate.astype(x.dtype)).astype(x.dtype)


if __name__ == "__main__":
    def make_case(case_key, B, C, H, W, dtype=jnp.float32, b_hp=1, gamma=2):
        kernel_size = int(abs((np.log2(C) + b_hp) / gamma))
        kernel_size = kernel_size if kernel_size % 2 else kernel_size + 1
        kx, kw = jax.random.split(case_key)
        x = jax.random.normal(kx, (B, C, H, W), dtype=jnp.float32).astype(dtype)
        bound = 1.0 / np.sqrt(kernel_size)  # Conv1d(1,1,k,bias=False) init range
        w = jax.random.uniform(kw, (kernel_size,), minval=-bound, maxval=bound,
                               dtype=jnp.float32)
        return x, w

    def check(out, x, w, rtol=1e-5, atol=1e-5):
        ref = eca_reference(x, w)
        np.testing.assert_allclose(
            np.asarray(out.astype(jnp.float32)),
            np.asarray(ref.astype(jnp.float32)),
            rtol=rtol, atol=atol)

    key = jax.random.PRNGKey(0)
    k0, k1, k2, k3 = jax.random.split(key, 4)

    # Case 1: single-pass path, HW multiple of 128 (lane-dense stores).
    x, w = make_case(k0, 2, 16, 16, 16)
    out = jax.block_until_ready(eca_forward(x, w))
    check(out, x, w)

    # Case 2: H*W = 49 (not a multiple of 128) -> unpadded, masked tail store.
    x, w = make_case(k1, 2, 16, 7, 7)
    out = jax.block_until_ready(eca_forward(x, w))
    check(out, x, w)

    # Case 3: force the two-phase HW-tiled path with a tiny working-set budget;
    # HW = 400 with tile_hw = 128 exercises the ragged last-tile masking.
    x, w = make_case(k2, 2, 16, 20, 20)
    out = jax.block_until_ready(eca_forward(x, w, max_working_set_bytes=48 * 1024))
    check(out, x, w)

    # Case 4: bf16 input on the single-pass path (widening f32 reduce).
    x, w = make_case(k3, 8, 16, 16, 16, dtype=jnp.bfloat16)
    out = jax.block_until_ready(eca_forward(x, w))
    check(out, x, w, rtol=2e-2, atol=2e-2)

    print("KERNEL_OK")
</pallas_src>

<mosaic_0001>
module attributes {stable_mosaic.version = 11 : i64} {
  func.func @_eca_single_pass_kernel(%arg0: i32, %arg1: memref<3xf32, #tpu.memory_space<smem>>, %arg2: memref<1x16x256xf32, #tpu.memory_space<vmem>>, %arg3: memref<1x16x256xf32, #tpu.memory_space<vmem>>) attributes {dimension_semantics = [#tpu.dimension_semantics<parallel>], iteration_bounds = array<i64: 2>, scalar_prefetch = 0 : i64, scratch_operands = 0 : i64, tpu.core_type = #tpu.core_type<tc>, window_params = [{transform_indices = @transform_0, window_bounds = array<i64: 3>}, {transform_indices = @transform_1, window_bounds = array<i64: 1, 16, 256>}, {transform_indices = @transform_2, window_bounds = array<i64: 1, 16, 256>}]} {
    %c0 = arith.constant 0 : index
    %c0_0 = arith.constant 0 : index
    %c0_1 = arith.constant 0 : index
    %0 = vector.load %arg2[%c0, %c0_0, %c0_1] : memref<1x16x256xf32, #tpu.memory_space<vmem>>, vector<1x16x256xf32>
    %cst = arith.constant dense<0.000000e+00> : vector<1x16xf32>
    %1 = vector.multi_reduction <add>, %0, %cst [2] : vector<1x16x256xf32> to vector<1x16xf32>
    %2 = vector.shape_cast %1 : vector<1x16xf32> to vector<1x16x1xf32>
    %cst_2 = arith.constant 3.906250e-03 : f32
    %3 = vector.broadcast %cst_2 : f32 to vector<1x16x1xf32>
    %4 = arith.mulf %2, %3 : vector<1x16x1xf32>
    %cst_3 = arith.constant 0.000000e+00 : f32
    %5 = vector.broadcast %cst_3 : f32 to vector<1x1x1xf32>
    %6 = tpu.concatenate %5, %4, %5 in 1 : vector<1x1x1xf32>, vector<1x16x1xf32>, vector<1x1x1xf32> -> vector<1x18x1xf32>
    %c0_4 = arith.constant 0 : index
    %7 = memref.load %arg1[%c0_4] : memref<3xf32, #tpu.memory_space<smem>>
    %8 = vector.extract_strided_slice %6 {offsets = [0, 0, 0], sizes = [1, 16, 1], strides = [1, 1, 1]} : vector<1x18x1xf32> to vector<1x16x1xf32>
    %9 = vector.broadcast %7 : f32 to vector<1x16x1xf32>
    %10 = arith.mulf %9, %8 : vector<1x16x1xf32>
    %c1 = arith.constant 1 : index
    %11 = memref.load %arg1[%c1] : memref<3xf32, #tpu.memory_space<smem>>
    %12 = vector.extract_strided_slice %6 {offsets = [0, 1, 0], sizes = [1, 16, 1], strides = [1, 1, 1]} : vector<1x18x1xf32> to vector<1x16x1xf32>
    %13 = vector.broadcast %11 : f32 to vector<1x16x1xf32>
    %14 = arith.mulf %13, %12 : vector<1x16x1xf32>
    %15 = arith.addf %10, %14 : vector<1x16x1xf32>
    %c2 = arith.constant 2 : index
    %16 = memref.load %arg1[%c2] : memref<3xf32, #tpu.memory_space<smem>>
    %17 = vector.extract_strided_slice %6 {offsets = [0, 2, 0], sizes = [1, 16, 1], strides = [1, 1, 1]} : vector<1x18x1xf32> to vector<1x16x1xf32>
    %18 = vector.broadcast %16 : f32 to vector<1x16x1xf32>
    %19 = arith.mulf %18, %17 : vector<1x16x1xf32>
    %20 = arith.addf %15, %19 : vector<1x16x1xf32>
    %21 = arith.negf %20 : vector<1x16x1xf32>
    %22 = math.exp %21 : vector<1x16x1xf32>
    %cst_5 = arith.constant 1.000000e+00 : f32
    %23 = vector.broadcast %cst_5 : f32 to vector<1x16x1xf32>
    %24 = arith.addf %23, %22 : vector<1x16x1xf32>
    %25 = arith.divf %23, %24 : vector<1x16x1xf32>
    %c0_6 = arith.constant 0 : index
    %c0_7 = arith.constant 0 : index
    %c0_8 = arith.constant 0 : index
    %26 = vector.load %arg2[%c0_6, %c0_7, %c0_8] : memref<1x16x256xf32, #tpu.memory_space<vmem>>, vector<1x16x256xf32>
    %27 = vector.broadcast %25 : vector<1x16x1xf32> to vector<1x16x256xf32>
    %28 = arith.mulf %26, %27 : vector<1x16x256xf32>
    %c0_9 = arith.constant 0 : index
    %c0_10 = arith.constant 0 : index
    %c0_11 = arith.constant 0 : index
    %29 = vector.load %arg3[%c0_9, %c0_10, %c0_11] : memref<1x16x256xf32, #tpu.memory_space<vmem>>, vector<1x16x256xf32>
    tpu.vector_store %arg3[%c0_9, %c0_10, %c0_11], %28 {strides = array<i32>} : memref<1x16x256xf32, #tpu.memory_space<vmem>>, vector<1x16x256xf32>,
    return
  }
  func.func @transform_0(%arg0: i32) -> i32 {
    %c0_i32 = arith.constant 0 : i32
    %c0_i32_0 = arith.constant 0 : i32
    return %c0_i32 : i32
  }
  func.func @transform_1(%arg0: i32) -> (i32, i32, i32) {
    %c0_i32 = arith.constant 0 : i32
    %c0_i32_0 = arith.constant 0 : i32
    %c0_i32_1 = arith.constant 0 : i32
    return %arg0, %c0_i32, %c0_i32_0 : i32, i32, i32
  }
  func.func @transform_2(%arg0: i32) -> (i32, i32, i32) {
    %c0_i32 = arith.constant 0 : i32
    %c0_i32_0 = arith.constant 0 : i32
    %c0_i32_1 = arith.constant 0 : i32
    return %arg0, %c0_i32, %c0_i32_0 : i32, i32, i32
  }
}

</mosaic_0001>

<llo_original>
// kernel: tpu_custom_call.1
$region0: #{tpu_custom_call.1}
  #allocation0 [shape = 'u32[]', space=smem, size = 0x4, offset = 0x4, fixed_abs, tag = 'smem constant byte address 0x4 - core index']
  #allocation1 [shape = 'u32[144,128]{1,0:T(1,128)}', space=vmem, size = 0x12000, scoped, tag = 'internal scratch']
  %s0 = inlined_call_operand.hbm [shape: f32[3], index: 0, kind: input, shape index: {}]
  %s1 = inlined_call_operand.hbm [shape: f32[2,16,256], index: 1, kind: input, shape index: {}]
  %s2 = inlined_call_operand.hbm [shape: f32[2,16,256], index: 2, kind: output, shape index: {}]
  %s3 = sld [smem:[#allocation0]]
  $region49: #{tpu_custom_call.1} parent=0
    _
  %s5 = ssub.s32 1, %s3
  %s6 = scalar_select 0, %s5, %s3
  $region1: #{tpu_custom_call.1} parent=0
    #allocation2 [shape = 'u8[512]{0}', space=smem, size = 0x200, scoped, tag = 'input window, operand 0, single buffered']
    #allocation3 [shape = 's32[2]{0}', space=sflag, size = 0x8, scoped, tag = 'scoped memory for tpu_custom_call.1']
    #allocation4 [shape = 's32[2]{0}', space=sflag, size = 0x8, scoped, tag = 'scoped memory for tpu_custom_call.1']
    #allocation5 [shape = 's32[2]{0}', space=sflag, size = 0x8, scoped, tag = 'scoped memory for tpu_custom_call.1']
    #allocation6 [shape = 'u8[32768]{0}', space=vmem, size = 0x8000, scoped, tag = 'input window, operand 1']
    #allocation7 [shape = 'u8[32768]{0}', space=vmem, size = 0x8000, scoped, tag = 'output window, operand 0']
    %7 = vsyncpa [#allocation5], 0
    %8 = vsyncpa [#allocation3], 0
    %s9 = scalar_lea.sflag [#allocation3], 1
    %10 = vsyncpa %s9, 0
    %11 = vsyncpa [#allocation4], 0
    %s12 = scalar_lea.sflag [#allocation4], 1
    %13 = vsyncpa %s12, 0
    loop: start=0, step=1, limit=4
    $region2: #{tpu_custom_call.1} parent=1 // loop_pre_header
      _
    $region3: #{tpu_custom_call.1} parent=1 // loop_header
      %s15 = sphi 0, %s19
      %p16 = scmp.ge.s32.totalorder %s15, 4
      %s23 = sphi 0, %s23
      %s25 = sphi 0, %s23
      %s26 = sphi 0, %s25
      %s40 = sphi 0, %s26
      %s46 = sphi 0, %s48
      %s49 = sphi 0, %s46
      %s50 = sphi 0, %s49
      %s66 = sphi 0, %s50
      %s72 = sphi 0, %s74
      %s75 = sphi 0, %s72
      %s76 = sphi 0, %s75
      %s92 = sphi 0, %s76
    $region4: #{tpu_custom_call.1} parent=1 // loop_header_branch
      %18 = sbr.rel (%p16) target = $region8
    $region5: #{tpu_custom_call.1} parent=1 // loop_body
      %s20 = ssub.s32 %s15, 1
      %s21 = ssub.s32 %s15, 2
      %s22 = sadd.s32 %s15, 1
      %s24 = sadd.s32 %s23, 1
      %p27 = scmp.eq.s32.totalorder %s15, 1
      %p28 = scmp.ne.s32.totalorder %s23, %s25
      %p29 = scmp.eq.s32.totalorder %s15, 0
      %p30 = por %p28, %p29
      %p31 = scmp.ne.s32.totalorder %s23, %s25
      %p32 = scmp.eq.s32.totalorder %s20, 1
      %p33 = por %p31, %p32
      %p34 = scmp.ne.s32.totalorder %s25, %s26
      %p35 = scmp.eq.s32.totalorder %s20, 0
      %p36 = por %p34, %p35
      %p37 = scmp.ne.s32.totalorder %s25, %s26
      %p38 = scmp.eq.s32.totalorder %s21, 1
      %p39 = por %p37, %p38
      %p41 = scmp.ne.s32.totalorder %s26, %s40
      %p42 = scmp.eq.s32.totalorder %s21, 0
      %p43 = por %p41, %p42
      %s44 = ssub.s32 %s15, %s22
      %p45 = scmp.eq.s32.totalorder %s44, 0
      %s47 = sadd.s32 %s46, 1
      %s48 = scalar_select %p45, %s46, %s47
      %p51 = pneg %p45
      %p52 = scmp.eq.s32.totalorder %s15, 1
      %p53 = por %p51, %p52
      %p54 = scmp.ne.s32.totalorder %s46, %s49
      %p55 = scmp.eq.s32.totalorder %s15, 0
      %p56 = por %p54, %p55
      %p57 = scmp.ne.s32.totalorder %s46, %s49
      %p58 = scmp.eq.s32.totalorder %s20, 1
      %p59 = por %p57, %p58
      %p60 = scmp.ne.s32.totalorder %s49, %s50
      %p61 = scmp.eq.s32.totalorder %s20, 0
      %p62 = por %p60, %p61
      %p63 = scmp.ne.s32.totalorder %s49, %s50
      %p64 = scmp.eq.s32.totalorder %s21, 1
      %p65 = por %p63, %p64
      %p67 = scmp.ne.s32.totalorder %s50, %s66
      %p68 = scmp.eq.s32.totalorder %s21, 0
      %p69 = por %p67, %p68
      %s70 = ssub.s32 %s15, %s22
      %p71 = scmp.eq.s32.totalorder %s70, 0
      %s73 = sadd.s32 %s72, 1
      %s74 = scalar_select %p71, %s72, %s73
      %p77 = pneg %p71
      %p78 = scmp.eq.s32.totalorder %s15, 1
      %p79 = por %p77, %p78
      %p80 = scmp.ne.s32.totalorder %s72, %s75
      %p81 = scmp.eq.s32.totalorder %s15, 0
      %p82 = por %p80, %p81
      %p83 = scmp.ne.s32.totalorder %s72, %s75
      %p84 = scmp.eq.s32.totalorder %s20, 1
      %p85 = por %p83, %p84
      %p86 = scmp.ne.s32.totalorder %s75, %s76
      %p87 = scmp.eq.s32.totalorder %s20, 0
      %p88 = por %p86, %p87
      %p89 = scmp.ne.s32.totalorder %s75, %s76
      %p90 = scmp.eq.s32.totalorder %s21, 1
      %p91 = por %p89, %p90
      %p93 = scmp.ne.s32.totalorder %s76, %s92
      %p94 = scmp.eq.s32.totalorder %s21, 0
      %p95 = por %p93, %p94
      %p96 = scmp.le.s32.totalorder 1, %s15
      %p97 = scmp.lt.s32.totalorder %s15, 3
      %p98 = pnand %p96, %p97
      %p99 = pneg %p98
      // Predicated region
      $region9: #{tpu_custom_call.1} parent=5 // pred_check
        _
      $region10: #{tpu_custom_call.1} parent=5 // pred_check_branch
        %101 = sbr.rel (%p98) target = $region12
      $region11: #{tpu_custom_call.1} parent=5 // pred_region
        %s102 = ssub.s32 %s15, 1
        // Predicated region
        $region13: #{tpu_custom_call.1} parent=11 // pred_check
          %p103 = pneg %p36
        $region14: #{tpu_custom_call.1} parent=11 // pred_check_branch
          %105 = sbr.rel (%p103) target = $region16
        $region15: #{tpu_custom_call.1} parent=11 // pred_region
          %s107 = ssub.s32 16, 16
          %108 = vsyncadd [#allocation5], %s107
          %111 = dma.hbm_to_smem %s0, 16, [#allocation2], [#allocation5]
        $region16: #{tpu_custom_call.1} parent=11 // pred_fallthru
          _
      $region12: #{tpu_custom_call.1} parent=5 // pred_fallthru
        _
      %p112 = scmp.lt.s32.totalorder %s15, 2
      // Predicated region
      $region17: #{tpu_custom_call.1} parent=5 // pred_check
        %p113 = pneg %p112
      $region18: #{tpu_custom_call.1} parent=5 // pred_check_branch
        %115 = sbr.rel (%p113) target = $region20
      $region19: #{tpu_custom_call.1} parent=5 // pred_region
        // Predicated region
        $region21: #{tpu_custom_call.1} parent=19 // pred_check
          %p116 = pneg %p56
        $region22: #{tpu_custom_call.1} parent=19 // pred_check_branch
          %118 = sbr.rel (%p116) target = $region24
        $region23: #{tpu_custom_call.1} parent=19 // pred_region
          %s119 = sand.u32 %s46, 1
          %s120 = scalar_lea.sflag [#allocation3], %s119
          %s121 = sand.u32 %s46, 1
          %s122 = smul.addr %s121, 32
          %s123 = scalar_lea.vmem [#allocation6], %s122
          %s125 = ssub.s32 512, 512
          %126 = vsyncadd %s120, %s125
          %s127 = smul.addr %s15, 4
          %s128 = smul.addr %s127, 128
          %s129 = scalar_lea.hbm %s1, %s128
          %s130 = sshll.u32 %s123, 4
          %s131 = int_to_ptr.vmem [resolvable:$true] %s130
          %136 = dma.hbm_to_vmem [thread:$0]  %s129, 512, %s131, %s120, 256, 256, 16
        $region24: #{tpu_custom_call.1} parent=19 // pred_fallthru
          _
      $region20: #{tpu_custom_call.1} parent=5 // pred_fallthru
        _
      %p137 = scmp.le.s32.totalorder 1, %s15
      %p138 = scmp.lt.s32.totalorder %s15, 3
      %p139 = pnand %p137, %p138
      %p140 = pneg %p139
      // Predicated region
      $region25: #{tpu_custom_call.1} parent=5 // pred_check
        _
      $region26: #{tpu_custom_call.1} parent=5 // pred_check_branch
        %142 = sbr.rel (%p139) target = $region28
      $region27: #{tpu_custom_call.1} parent=5 // pred_region
        %s143 = ssub.s32 %s15, 1
        // Predicated region
        $region29: #{tpu_custom_call.1} parent=27 // pred_check
          %p144 = pneg %p36
        $region30: #{tpu_custom_call.1} parent=27 // pred_check_branch
          %146 = sbr.rel (%p144) target = $region32
        $region31: #{tpu_custom_call.1} parent=27 // pred_region
          %147 = dma.done [#allocation5], 16
        $region32: #{tpu_custom_call.1} parent=27 // pred_fallthru
          _
        %s148 = sand.u32 %s49, 1
        %s149 = scalar_lea.sflag [#allocation3], %s148
        %s150 = sand.u32 %s49, 1
        %s151 = smul.addr %s150, 32
        %s152 = scalar_lea.vmem [#allocation6], %s151
        // Predicated region
        $region33: #{tpu_custom_call.1} parent=27 // pred_check
          %p153 = pneg %p62
        $region34: #{tpu_custom_call.1} parent=27 // pred_check_branch
          %155 = sbr.rel (%p153) target = $region36
        $region35: #{tpu_custom_call.1} parent=27 // pred_region
          %156 = dma.done %s149, 512
        $region36: #{tpu_custom_call.1} parent=27 // pred_fallthru
          _
        %157 = sfence
        %p158 = pneg %p36
        %p159 = pneg %p33
        %s160 = sand.u32 %s49, 1
        %s161 = scalar_lea.sflag [#allocation3], %s160
        %s162 = sand.u32 %s49, 1
        %s163 = smul.addr %s162, 32
        %s164 = scalar_lea.vmem [#allocation6], %s163
        %p165 = pneg %p62
        %p166 = pneg %p59
        %p167 = pneg %p88
        %p168 = pneg %p85
        %s169 = sand.u32 %s75, 1
        %s170 = scalar_lea.sflag [#allocation4], %s169
        %s171 = sand.u32 %s75, 1
        %s172 = smul.addr %s171, 32
        %s173 = scalar_lea.vmem [#allocation7], %s172
        %v174 = vld [vmem:[%s152] sm:$0xff]
        %v175 = vld [vmem:[%s152 + $0x8] sm:$0xff]
        %v176 = vld [vmem:[%s152 + $0x10] sm:$0xff]
        %v177 = vld [vmem:[%s152 + $0x18] sm:$0xff]
        %v178 = vadd.f32 %v174, %v175
        %179 = vadd.xlane.f32.xlu0 %v178
        %v180 = vpop.xlane.xlu0 %179
        %v181 = vadd.f32 %v176, %v177
        %182 = vadd.xlane.f32.xlu0 %v181
        %v183 = vpop.xlane.xlu0 %182
        %v184 = vmul.f32 %v180, 0.00390625
        %v185 = vmul.f32 %v183, 0.00390625
        %vm188 = vcmask 1040384
        %v189 = vrot.slane %v184, 7
        %v190 = vrot.slane %v185, 7
        %v191 = vsel %vm188, %v189, %v190
        %v195 = vsel %vm188, 0.0, %v189
        %v196 = vsel %vm188, %v190, 0.0
        %s197 = sld [smem:[#allocation2]]
        %v198 = vstv %s197
        %v199 = vmul.f32 %v198, %v195
        %v200 = vmul.f32 %v198, %v191
        %s201 = sld [smem:[#allocation2 + $0x1]]
        %v202 = vstv %s201
        %v203 = vmul.f32 %v202, %v195
        %v204 = vmul.f32 %v202, %v191
        %v205 = vmul.f32 %v202, %v196
        %vm209 = vcmask 1046528
        %v210 = vrot.slane %v203, 1
        %v211 = vrot.slane %v204, 1
        %v212 = vsel %vm209, %v210, %v211
        %v213 = vrot.slane %v205, 1
        %v214 = vsel %vm209, %v211, %v213
        %v217 = vadd.f32 %v199, %v212
        %v218 = vadd.f32 %v200, %v214
        %s219 = sld [smem:[#allocation2 + $0x2]]
        %v220 = vstv %s219
        %v221 = vmul.f32 %v220, %v195
        %v222 = vmul.f32 %v220, %v191
        %v223 = vmul.f32 %v220, %v196
        %vm227 = vcmask 1045504
        %v228 = vrot.slane %v221, 2
        %v229 = vrot.slane %v222, 2
        %v230 = vsel %vm227, %v228, %v229
        %v231 = vrot.slane %v223, 2
        %v232 = vsel %vm227, %v229, %v231
        %v235 = vadd.f32 %v217, %v230
        %v236 = vadd.f32 %v218, %v232
        %v237 = vxor.u32 %v235, 2147483648
        %v238 = vxor.u32 %v236, 2147483648
        %v239 = vmul.f32 %v237, 1.442695
        %v240 = vpow.pop %v239
        %v241 = vmul.f32 %v238, 1.442695
        %v242 = vpow.pop %v241
        %v243 = vadd.f32 %v240, 1.0
        %v244 = vadd.f32 %v242, 1.0
        %v245 = vrcp.pop %v243
        %v246 = vmul.f32 1.0, %v245
        %v247 = vrcp.pop %v244
        %v248 = vmul.f32 1.0, %v247
        %250 = vset.pattern.permute.xlu0 0
        %251 = vperm.xlu0 %250, %v246
        %v252 = vpop.permute.xlu0 %251
        %255 = vset.pattern.permute.xlu0 0
        %256 = vperm.xlu0 %255, %v248
        %v257 = vpop.permute.xlu0 %256
        %v259 = vmul.f32 %v174, %v252
        %v260 = vmul.f32 %v175, %v252
        %v261 = vmul.f32 %v176, %v257
        %v262 = vmul.f32 %v177, %v257
        %263 = vst [vmem:[%s173] sm:$0xff] %v259
        %264 = vst [vmem:[%s173 + $0x8] sm:$0xff] %v260
        %265 = vst [vmem:[%s173 + $0x10] sm:$0xff] %v261
        %266 = vst [vmem:[%s173 + $0x18] sm:$0xff] %v262
        %s267 = sand.u32 %s75, 1
        %s268 = scalar_lea.sflag [#allocation4], %s267
        %s269 = sand.u32 %s75, 1
        %s270 = smul.addr %s269, 32
        %s271 = scalar_lea.vmem [#allocation7], %s270
        // Predicated region
        $region37: #{tpu_custom_call.1} parent=27 // pred_check
          %p272 = pneg %p85
        $region38: #{tpu_custom_call.1} parent=27 // pred_check_branch
          %274 = sbr.rel (%p272) target = $region40
        $region39: #{tpu_custom_call.1} parent=27 // pred_region
          %s276 = ssub.s32 512, 512
          %277 = vsyncadd %s268, %s276
          %s278 = smul.addr %s20, 4
          %s279 = smul.addr %s278, 128
          %s280 = scalar_lea.hbm %s2, %s279
          %s281 = sshll.u32 %s271, 4
          %s282 = int_to_ptr.vmem [resolvable:$true] %s281
          %287 = dma.vmem_to_hbm [thread:$0]  %s282, 512, %s280, %s268, 256, 256, 16
        $region40: #{tpu_custom_call.1} parent=27 // pred_fallthru
          _
      $region28: #{tpu_custom_call.1} parent=5 // pred_fallthru
        _
      %p288 = scmp.le.s32.totalorder 2, %s15
      // Predicated region
      $region41: #{tpu_custom_call.1} parent=5 // pred_check
        %p289 = pneg %p288
      $region42: #{tpu_custom_call.1} parent=5 // pred_check_branch
        %291 = sbr.rel (%p289) target = $region44
      $region43: #{tpu_custom_call.1} parent=5 // pred_region
        %s292 = ssub.s32 %s15, 2
        // Predicated region
        $region45: #{tpu_custom_call.1} parent=43 // pred_check
          %p293 = pneg %p91
        $region46: #{tpu_custom_call.1} parent=43 // pred_check_branch
          %295 = sbr.rel (%p293) target = $region48
        $region47: #{tpu_custom_call.1} parent=43 // pred_region
          %s296 = sand.u32 %s76, 1
          %s297 = scalar_lea.sflag [#allocation4], %s296
          %s298 = sand.u32 %s76, 1
          %s299 = smul.addr %s298, 32
          %s300 = scalar_lea.vmem [#allocation7], %s299
          %301 = dma.done %s297, 512
        $region48: #{tpu_custom_call.1} parent=43 // pred_fallthru
          _
      $region44: #{tpu_custom_call.1} parent=5 // pred_fallthru
        _
    $region6: #{tpu_custom_call.1} parent=1 // loop_footer
      %s19 = sadd.s32 1, %s15
    $region7: #{tpu_custom_call.1} parent=1 // loop_footer_branch
      %14 = sbr.rel target = $region3
    $region8: #{tpu_custom_call.1} parent=1 // loop_exit
      _
    %302 = vsyncpa [#allocation3], 1
    %s303 = scalar_lea.sflag [#allocation3], 1
    %304 = vsyncpa %s303, 1
    %305 = vsyncpa [#allocation4], 1
    %s306 = scalar_lea.sflag [#allocation4], 1
    %307 = vsyncpa %s306, 1
    %308 = vsyncpa [#allocation5], 1
    %s309 = scalar_lea.sflag [#allocation5], 1
    %310 = vsyncpa %s309, 1

</llo_original>
